<compile_context>
chip_gen: v6e
topology: v6e:2x2x1
jax: 0.10.0
libtpu: 0.0.40
codegen_flags: <defaults>
</compile_context>

<pallas_src>
import numpy as np
import jax
import jax.numpy as jnp
from jax.experimental import pallas as pl
from jax.experimental.pallas import tpu as pltpu

HIDDEN_SIZE = 32      # hidden_size argument of Adv_agent_actor
INITIAL_STD = 1.0     # initial_std argument
BATCH = 16            # example batch size
MAX_TB = 256          # batch tile for large batches (MXU-friendly M)


def _arctan_f32(x):
    """Float32 arctan (Cephes atanf-style minimax poly + range reduction).

    Implemented manually because lax.atan has no Mosaic lowering; accurate to
    a few f32 ulps, matching torch.arctan semantics in float32.
    """
    sign = jnp.where(x < 0.0, jnp.float32(-1.0), jnp.float32(1.0))
    a = jnp.abs(x)
    big = a > jnp.float32(2.414213562373095)        # tan(3*pi/8)
    mid = jnp.logical_and(a > jnp.float32(0.4142135623730950),
                          jnp.logical_not(big))
    a_safe = jnp.where(big, a, jnp.float32(1.0))    # avoid 1/0 in dead branch
    t = jnp.where(
        big,
        -jnp.float32(1.0) / a_safe,
        jnp.where(mid, (a - jnp.float32(1.0)) / (a + jnp.float32(1.0)), a),
    )
    y0 = jnp.where(
        big,
        jnp.float32(np.pi / 2),
        jnp.where(mid, jnp.float32(np.pi / 4), jnp.float32(0.0)),
    )
    z = t * t
    p = ((jnp.float32(8.05374449538e-2) * z - jnp.float32(1.38776856032e-1)) * z
         + jnp.float32(1.99777106478e-1)) * z - jnp.float32(3.33329491539e-1)
    return sign * (y0 + (p * z * t + t))


def _actor_kernel(x_ref, wa_ref, ba_ref, w2_ref, b2_ref, wo_ref, bo_ref,
                  out_ref):
    x = x_ref[...]                                                 # (TB, H) f32

    # ---- fused first layer of both heads: x @ [w1 | ws1] + [b1 | bs1] ----
    a = jnp.tanh(
        jnp.dot(x.astype(jnp.bfloat16), wa_ref[...],
                preferred_element_type=jnp.float32) + ba_ref[...])  # (TB, 256)
    h1 = a[:, :128]                                                # mean head
    s1 = a[:, 128:]                                                # log_std head

    # ---- mean head hidden layer: Linear(128,128) + tanh ----
    h2 = jnp.tanh(
        jnp.dot(h1.astype(jnp.bfloat16), w2_ref[...],
                preferred_element_type=jnp.float32) + b2_ref[...])  # (TB, 128)

    # ---- fused output projection: [h2 | s1] @ blockdiag(w3, ws2) + [b3|bs2]
    cat = jnp.concatenate([h2, s1], axis=-1).astype(jnp.bfloat16)  # (TB, 256)
    o = jnp.dot(cat, wo_ref[...],
                preferred_element_type=jnp.float32) + bo_ref[...]  # (TB, 2)

    # lane 0 -> arctan(mean_linear); lane 1 -> exp(log_std) * initial_std
    lane = jax.lax.broadcasted_iota(jnp.int32, o.shape, 1)
    out_ref[...] = jnp.where(lane == 0,
                             _arctan_f32(o),
                             jnp.exp(o) * jnp.float32(INITIAL_STD))


def _fuse_params(params):
    """Pre-fuse / pre-cast the 5 Linear layers into 3 kernel weight blocks."""
    (w1, b1, w2, b2, w3, b3, ws1, bs1, ws2, bs2) = params
    wa = jnp.concatenate([w1, ws1], axis=1).astype(jnp.bfloat16)   # (H, 256)
    ba = jnp.concatenate([b1, bs1], axis=1).astype(jnp.float32)    # (1, 256)
    w2b = w2.astype(jnp.bfloat16)                                  # (128, 128)
    b2f = b2.astype(jnp.float32)                                   # (1, 128)
    wo = jnp.zeros((256, 2), jnp.float32)
    wo = wo.at[:128, 0:1].set(w3).at[128:, 1:2].set(ws2)
    wo = wo.astype(jnp.bfloat16)                                   # (256, 2)
    bo = jnp.concatenate([b3, bs2], axis=1).astype(jnp.float32)    # (1, 2)
    return wa, ba, w2b, b2f, wo, bo


def adv_agent_actor_forward(hidden_state, params):
    """Pallas-backed forward of Adv_agent_actor. Returns (mean, std)."""
    if isinstance(hidden_state, tuple):
        hidden_state = hidden_state[0]
    x = hidden_state.astype(jnp.float32)
    B, H = x.shape
    if B <= MAX_TB:
        tb = B                     # single grid step; block == full array
    else:
        assert B % MAX_TB == 0, "large batch must be a multiple of MAX_TB"
        tb = MAX_TB

    wa, ba, w2b, b2f, wo, bo = _fuse_params(params)
    full = lambda shape: pl.BlockSpec(shape, lambda i: (0, 0))

    grid_spec = pltpu.PrefetchScalarGridSpec(
        num_scalar_prefetch=0,
        grid=(B // tb,),
        in_specs=[
            pl.BlockSpec((tb, H), lambda i: (i, 0)),   # x
            full((H, 256)), full((1, 256)),            # fused layer 1 (both heads)
            full((128, 128)), full((1, 128)),          # mean hidden layer
            full((256, 2)), full((1, 2)),              # fused output projection
        ],
        out_specs=pl.BlockSpec((tb, 2), lambda i: (i, 0)),
    )

    out = pl.pallas_call(
        _actor_kernel,
        out_shape=jax.ShapeDtypeStruct((B, 2), jnp.float32),
        grid_spec=grid_spec,
        compiler_params=pltpu.CompilerParams(
            dimension_semantics=("parallel",)),
    )(x, wa, ba, w2b, b2f, wo, bo)

    mean = out[:, 0:1]
    std = out[:, 1:2]
    return mean, std


def init_params(key, hidden_size):
    """Deterministic synthetic init mirroring layer_init (orthogonal W, zero b).

    Weights stored as (in_features, out_features); biases as (1, out)."""
    ks = jax.random.split(key, 5)
    orth = lambda k, shape, std: jax.nn.initializers.orthogonal(scale=std)(
        k, shape, jnp.float32)
    w1 = orth(ks[0], (hidden_size, 128), np.sqrt(2));  b1 = jnp.zeros((1, 128), jnp.float32)
    w2 = orth(ks[1], (128, 128), np.sqrt(2));          b2 = jnp.zeros((1, 128), jnp.float32)
    w3 = orth(ks[2], (128, 1), 0.01);                  b3 = jnp.zeros((1, 1), jnp.float32)
    ws1 = orth(ks[3], (hidden_size, 128), np.sqrt(2)); bs1 = jnp.zeros((1, 128), jnp.float32)
    ws2 = orth(ks[4], (128, 1), 0.01);                 bs2 = jnp.zeros((1, 1), jnp.float32)
    return (w1, b1, w2, b2, w3, b3, ws1, bs1, ws2, bs2)


def _reference_forward(x, params):
    """Plain-JAX f32 reference of the PyTorch forward, for a sanity check."""
    (w1, b1, w2, b2, w3, b3, ws1, bs1, ws2, bs2) = params
    h = jnp.tanh(x @ w1 + b1)
    h = jnp.tanh(h @ w2 + b2)
    mean = jnp.arctan(h @ w3 + b3)
    s = jnp.tanh(x @ ws1 + bs1)
    std = jnp.exp(s @ ws2 + bs2) * INITIAL_STD
    return mean, std


if __name__ == "__main__":
    key = jax.random.PRNGKey(0)
    k_param, k_x = jax.random.split(key)
    params = init_params(k_param, HIDDEN_SIZE)
    hidden_state = jax.random.normal(k_x, (BATCH, HIDDEN_SIZE), jnp.float32)

    mean, std = adv_agent_actor_forward(hidden_state, params)
    jax.block_until_ready((mean, std))

    ref_mean, ref_std = _reference_forward(hidden_state, params)
    # bf16 matmul inputs with f32 accumulation -> slightly looser tolerance.
    np.testing.assert_allclose(np.asarray(mean), np.asarray(ref_mean),
                               rtol=5e-3, atol=3e-3)
    np.testing.assert_allclose(np.asarray(std), np.asarray(ref_std),
                               rtol=5e-3, atol=3e-3)
    assert mean.shape == (BATCH, 1) and std.shape == (BATCH, 1)
    print("KERNEL_OK")
</pallas_src>

<mosaic_0001>
module attributes {stable_mosaic.version = 11 : i64} {
  func.func @_actor_kernel(%arg0: i32, %arg1: memref<16x32xf32, #tpu.memory_space<vmem>>, %arg2: memref<32x256xbf16, #tpu.memory_space<vmem>>, %arg3: memref<1x256xf32, #tpu.memory_space<vmem>>, %arg4: memref<128x128xbf16, #tpu.memory_space<vmem>>, %arg5: memref<1x128xf32, #tpu.memory_space<vmem>>, %arg6: memref<256x2xbf16, #tpu.memory_space<vmem>>, %arg7: memref<1x2xf32, #tpu.memory_space<vmem>>, %arg8: memref<16x2xf32, #tpu.memory_space<vmem>>) attributes {dimension_semantics = [#tpu.dimension_semantics<parallel>], iteration_bounds = array<i64: 1>, scalar_prefetch = 0 : i64, scratch_operands = 0 : i64, tpu.core_type = #tpu.core_type<tc>, window_params = [{transform_indices = @transform_0, window_bounds = array<i64: 16, 32>}, {pipeline_mode = #tpu.pipeline_mode<synchronous>, transform_indices = @transform_1, window_bounds = array<i64: 32, 256>}, {pipeline_mode = #tpu.pipeline_mode<synchronous>, transform_indices = @transform_2, window_bounds = array<i64: 1, 256>}, {pipeline_mode = #tpu.pipeline_mode<synchronous>, transform_indices = @transform_3, window_bounds = array<i64: 128, 128>}, {pipeline_mode = #tpu.pipeline_mode<synchronous>, transform_indices = @transform_4, window_bounds = array<i64: 1, 128>}, {pipeline_mode = #tpu.pipeline_mode<synchronous>, transform_indices = @transform_5, window_bounds = array<i64: 256, 2>}, {pipeline_mode = #tpu.pipeline_mode<synchronous>, transform_indices = @transform_6, window_bounds = array<i64: 1, 2>}, {transform_indices = @transform_7, window_bounds = array<i64: 16, 2>}]} {
    %c0 = arith.constant 0 : index
    %c0_0 = arith.constant 0 : index
    %0 = vector.load %arg1[%c0, %c0_0] : memref<16x32xf32, #tpu.memory_space<vmem>>, vector<16x32xf32>
    %1 = arith.truncf %0 : vector<16x32xf32> to vector<16x32xbf16>
    %c0_1 = arith.constant 0 : index
    %c0_2 = arith.constant 0 : index
    %2 = vector.load %arg2[%c0_1, %c0_2] : memref<32x256xbf16, #tpu.memory_space<vmem>>, vector<32x256xbf16>
    %cst = arith.constant dense<0.000000e+00> : vector<16x256xf32>
    %3 = tpu.matmul %1, %2, %cst {dimension_numbers = #tpu.dot_dimension_numbers<[1], [0], [0], [1], [0, 0, 1, 1], [], []>} : vector<16x32xbf16>, vector<32x256xbf16>, vector<16x256xf32> -> vector<16x256xf32>
    %c0_3 = arith.constant 0 : index
    %c0_4 = arith.constant 0 : index
    %4 = vector.load %arg3[%c0_3, %c0_4] : memref<1x256xf32, #tpu.memory_space<vmem>>, vector<1x256xf32>
    %5 = vector.broadcast %4 : vector<1x256xf32> to vector<16x256xf32>
    %6 = arith.addf %3, %5 : vector<16x256xf32>
    %7 = math.tanh %6 : vector<16x256xf32>
    %8 = vector.extract_strided_slice %7 {offsets = [0, 0], sizes = [16, 128], strides = [1, 1]} : vector<16x256xf32> to vector<16x128xf32>
    %9 = vector.extract_strided_slice %7 {offsets = [0, 128], sizes = [16, 128], strides = [1, 1]} : vector<16x256xf32> to vector<16x128xf32>
    %10 = arith.truncf %8 : vector<16x128xf32> to vector<16x128xbf16>
    %c0_5 = arith.constant 0 : index
    %c0_6 = arith.constant 0 : index
    %11 = vector.load %arg4[%c0_5, %c0_6] : memref<128x128xbf16, #tpu.memory_space<vmem>>, vector<128x128xbf16>
    %cst_7 = arith.constant dense<0.000000e+00> : vector<16x128xf32>
    %12 = tpu.matmul %10, %11, %cst_7 {dimension_numbers = #tpu.dot_dimension_numbers<[1], [0], [0], [1], [0, 0, 1, 1], [], []>} : vector<16x128xbf16>, vector<128x128xbf16>, vector<16x128xf32> -> vector<16x128xf32>
    %c0_8 = arith.constant 0 : index
    %c0_9 = arith.constant 0 : index
    %13 = vector.load %arg5[%c0_8, %c0_9] : memref<1x128xf32, #tpu.memory_space<vmem>>, vector<1x128xf32>
    %14 = vector.broadcast %13 : vector<1x128xf32> to vector<16x128xf32>
    %15 = arith.addf %12, %14 : vector<16x128xf32>
    %16 = math.tanh %15 : vector<16x128xf32>
    %17 = tpu.concatenate %16, %9 in 1 : vector<16x128xf32>, vector<16x128xf32> -> vector<16x256xf32>
    %18 = arith.truncf %17 : vector<16x256xf32> to vector<16x256xbf16>
    %c0_10 = arith.constant 0 : index
    %c0_11 = arith.constant 0 : index
    %19 = vector.load %arg6[%c0_10, %c0_11] : memref<256x2xbf16, #tpu.memory_space<vmem>>, vector<256x2xbf16>
    %cst_12 = arith.constant dense<0.000000e+00> : vector<16x2xf32>
    %20 = tpu.matmul %18, %19, %cst_12 {dimension_numbers = #tpu.dot_dimension_numbers<[1], [0], [0], [1], [0, 0, 1, 1], [], []>} : vector<16x256xbf16>, vector<256x2xbf16>, vector<16x2xf32> -> vector<16x2xf32>
    %c0_13 = arith.constant 0 : index
    %c0_14 = arith.constant 0 : index
    %21 = vector.load %arg7[%c0_13, %c0_14] : memref<1x2xf32, #tpu.memory_space<vmem>>, vector<1x2xf32>
    %22 = vector.broadcast %21 : vector<1x2xf32> to vector<16x2xf32>
    %23 = arith.addf %20, %22 : vector<16x2xf32>
    %24 = tpu.iota {dimensions = array<i32: 1>} : vector<16x2xi32>
    %c0_i32 = arith.constant 0 : i32
    %25 = vector.broadcast %c0_i32 : i32 to vector<16x2xi32>
    %26 = arith.cmpi eq, %24, %25 : vector<16x2xi32>
    %cst_15 = arith.constant 0.000000e+00 : f32
    %27 = vector.broadcast %cst_15 : f32 to vector<16x2xf32>
    %28 = arith.cmpf olt, %23, %27 : vector<16x2xf32>
    %cst_16 = arith.constant -1.000000e+00 : f32
    %cst_17 = arith.constant 1.000000e+00 : f32
    %29 = vector.broadcast %cst_16 : f32 to vector<16x2xf32>
    %30 = vector.broadcast %cst_17 : f32 to vector<16x2xf32>
    %31 = arith.select %28, %29, %30 : vector<16x2xi1>, vector<16x2xf32>
    %32 = math.absf %23 : vector<16x2xf32>
    %cst_18 = arith.constant 2.41421366 : f32
    %33 = vector.broadcast %cst_18 : f32 to vector<16x2xf32>
    %34 = arith.cmpf ogt, %32, %33 : vector<16x2xf32>
    %cst_19 = arith.constant 0.414213568 : f32
    %35 = vector.broadcast %cst_19 : f32 to vector<16x2xf32>
    %36 = arith.cmpf ogt, %32, %35 : vector<16x2xf32>
    %cst_20 = arith.constant dense<true> : vector<16x2xi1>
    %37 = arith.xori %34, %cst_20 : vector<16x2xi1>
    %38 = arith.andi %36, %37 : vector<16x2xi1>
    %cst_21 = arith.constant 1.000000e+00 : f32
    %39 = vector.broadcast %cst_21 : f32 to vector<16x2xf32>
    %40 = arith.select %34, %32, %39 : vector<16x2xi1>, vector<16x2xf32>
    %cst_22 = arith.constant 0.000000e+00 : f32
    %cst_23 = arith.constant 1.000000e+00 : f32
    %41 = arith.subf %cst_22, %cst_23 : f32
    %42 = vector.broadcast %41 : f32 to vector<16x2xf32>
    %43 = arith.divf %42, %40 : vector<16x2xf32>
    %cst_24 = arith.constant 1.000000e+00 : f32
    %44 = vector.broadcast %cst_24 : f32 to vector<16x2xf32>
    %45 = arith.subf %32, %44 : vector<16x2xf32>
    %cst_25 = arith.constant 1.000000e+00 : f32
    %46 = vector.broadcast %cst_25 : f32 to vector<16x2xf32>
    %47 = arith.addf %32, %46 : vector<16x2xf32>
    %48 = arith.divf %45, %47 : vector<16x2xf32>
    %49 = arith.select %38, %48, %32 : vector<16x2xi1>, vector<16x2xf32>
    %50 = arith.select %34, %43, %49 : vector<16x2xi1>, vector<16x2xf32>
    %cst_26 = arith.constant 0.785398185 : f32
    %cst_27 = arith.constant 0.000000e+00 : f32
    %51 = vector.broadcast %cst_26 : f32 to vector<16x2xf32>
    %52 = vector.broadcast %cst_27 : f32 to vector<16x2xf32>
    %53 = arith.select %38, %51, %52 : vector<16x2xi1>, vector<16x2xf32>
    %cst_28 = arith.constant 1.57079637 : f32
    %54 = vector.broadcast %cst_28 : f32 to vector<16x2xf32>
    %55 = arith.select %34, %54, %53 : vector<16x2xi1>, vector<16x2xf32>
    %56 = arith.mulf %50, %50 : vector<16x2xf32>
    %cst_29 = arith.constant 0.0805374458 : f32
    %57 = vector.broadcast %cst_29 : f32 to vector<16x2xf32>
    %58 = arith.mulf %57, %56 : vector<16x2xf32>
    %cst_30 = arith.constant 0.138776854 : f32
    %59 = vector.broadcast %cst_30 : f32 to vector<16x2xf32>
    %60 = arith.subf %58, %59 : vector<16x2xf32>
    %61 = arith.mulf %60, %56 : vector<16x2xf32>
    %cst_31 = arith.constant 0.199777111 : f32
    %62 = vector.broadcast %cst_31 : f32 to vector<16x2xf32>
    %63 = arith.addf %61, %62 : vector<16x2xf32>
    %64 = arith.mulf %63, %56 : vector<16x2xf32>
    %cst_32 = arith.constant 0.333329499 : f32
    %65 = vector.broadcast %cst_32 : f32 to vector<16x2xf32>
    %66 = arith.subf %64, %65 : vector<16x2xf32>
    %67 = arith.mulf %66, %56 : vector<16x2xf32>
    %68 = arith.mulf %67, %50 : vector<16x2xf32>
    %69 = arith.addf %68, %50 : vector<16x2xf32>
    %70 = arith.addf %55, %69 : vector<16x2xf32>
    %71 = arith.mulf %31, %70 : vector<16x2xf32>
    %72 = math.exp %23 : vector<16x2xf32>
    %cst_33 = arith.constant 1.000000e+00 : f32
    %73 = vector.broadcast %cst_33 : f32 to vector<16x2xf32>
    %74 = arith.mulf %72, %73 : vector<16x2xf32>
    %75 = arith.select %26, %71, %74 : vector<16x2xi1>, vector<16x2xf32>
    %c0_34 = arith.constant 0 : index
    %c0_35 = arith.constant 0 : index
    %76 = vector.load %arg8[%c0_34, %c0_35] : memref<16x2xf32, #tpu.memory_space<vmem>>, vector<16x2xf32>
    tpu.vector_store %arg8[%c0_34, %c0_35], %75 {strides = array<i32>} : memref<16x2xf32, #tpu.memory_space<vmem>>, vector<16x2xf32>,
    return
  }
  func.func @transform_0(%arg0: i32) -> (i32, i32) {
    %c0_i32 = arith.constant 0 : i32
    %c0_i32_0 = arith.constant 0 : i32
    return %arg0, %c0_i32 : i32, i32
  }
  func.func @transform_1(%arg0: i32) -> (i32, i32) {
    %c0_i32 = arith.constant 0 : i32
    %c0_i32_0 = arith.constant 0 : i32
    %c0_i32_1 = arith.constant 0 : i32
    return %c0_i32, %c0_i32_0 : i32, i32
  }
  func.func @transform_2(%arg0: i32) -> (i32, i32) {
    %c0_i32 = arith.constant 0 : i32
    %c0_i32_0 = arith.constant 0 : i32
    %c0_i32_1 = arith.constant 0 : i32
    return %c0_i32, %c0_i32_0 : i32, i32
  }
  func.func @transform_3(%arg0: i32) -> (i32, i32) {
    %c0_i32 = arith.constant 0 : i32
    %c0_i32_0 = arith.constant 0 : i32
    %c0_i32_1 = arith.constant 0 : i32
    return %c0_i32, %c0_i32_0 : i32, i32
  }
  func.func @transform_4(%arg0: i32) -> (i32, i32) {
    %c0_i32 = arith.constant 0 : i32
    %c0_i32_0 = arith.constant 0 : i32
    %c0_i32_1 = arith.constant 0 : i32
    return %c0_i32, %c0_i32_0 : i32, i32
  }
  func.func @transform_5(%arg0: i32) -> (i32, i32) {
    %c0_i32 = arith.constant 0 : i32
    %c0_i32_0 = arith.constant 0 : i32
    %c0_i32_1 = arith.constant 0 : i32
    return %c0_i32, %c0_i32_0 : i32, i32
  }
  func.func @transform_6(%arg0: i32) -> (i32, i32) {
    %c0_i32 = arith.constant 0 : i32
    %c0_i32_0 = arith.constant 0 : i32
    %c0_i32_1 = arith.constant 0 : i32
    return %c0_i32, %c0_i32_0 : i32, i32
  }
  func.func @transform_7(%arg0: i32) -> (i32, i32) {
    %c0_i32 = arith.constant 0 : i32
    %c0_i32_0 = arith.constant 0 : i32
    return %arg0, %c0_i32 : i32, i32
  }
}

</mosaic_0001>

<llo_original>
// kernel: tpu_custom_call.1
$region0: #{tpu_custom_call.1}
  #allocation0 [shape = 'u32[]', space=smem, size = 0x4, offset = 0x4, fixed_abs, tag = 'smem constant byte address 0x4 - core index']
  #allocation1 [shape = 'u32[144,128]{1,0:T(1,128)}', space=vmem, size = 0x12000, scoped, tag = 'internal scratch']
  %s0 = inlined_call_operand.vmem [shape: f32[16,32], index: 0, kind: input, shape index: {}]
  %s1 = inlined_call_operand.vmem [shape: bf16[32,256], index: 1, kind: input, shape index: {}]
  %s2 = inlined_call_operand.vmem [shape: f32[1,256], index: 2, kind: input, shape index: {}]
  %s3 = inlined_call_operand.vmem [shape: bf16[128,128], index: 3, kind: input, shape index: {}]
  %s4 = inlined_call_operand.vmem [shape: f32[1,128], index: 4, kind: input, shape index: {}]
  %s5 = inlined_call_operand.vmem [shape: bf16[256,2], index: 5, kind: input, shape index: {}]
  %s6 = inlined_call_operand.vmem [shape: f32[1,2], index: 6, kind: input, shape index: {}]
  %s7 = inlined_call_operand.vmem [shape: f32[16,2], index: 7, kind: output, shape index: {}]
  %s8 = sld [smem:[#allocation0]]
  $region38: #{tpu_custom_call.1} parent=0
    _
  %s10 = ssub.s32 1, %s8
  %s11 = scalar_select 0, %s10, %s8
  // Predicated region
  $region2: #{tpu_custom_call.1} parent=0 // pred_check
    _
  $region3: #{tpu_custom_call.1} parent=0 // pred_check_branch
    %13 = sbr.rel (0) target = $region5
  $region4: #{tpu_custom_call.1} parent=0 // pred_region
    _
  $region5: #{tpu_custom_call.1} parent=0 // pred_fallthru
    _
  // Predicated region
  $region6: #{tpu_custom_call.1} parent=0 // pred_check
    _
  $region7: #{tpu_custom_call.1} parent=0 // pred_check_branch
    %15 = sbr.rel (0) target = $region9
  $region8: #{tpu_custom_call.1} parent=0 // pred_region
    _
  $region9: #{tpu_custom_call.1} parent=0 // pred_fallthru
    _
  // Predicated region
  $region10: #{tpu_custom_call.1} parent=0 // pred_check
    _
  $region11: #{tpu_custom_call.1} parent=0 // pred_check_branch
    %17 = sbr.rel (0) target = $region13
  $region12: #{tpu_custom_call.1} parent=0 // pred_region
    _
  $region13: #{tpu_custom_call.1} parent=0 // pred_fallthru
    _
  // Predicated region
  $region14: #{tpu_custom_call.1} parent=0 // pred_check
    _
  $region15: #{tpu_custom_call.1} parent=0 // pred_check_branch
    %19 = sbr.rel (0) target = $region17
  $region16: #{tpu_custom_call.1} parent=0 // pred_region
    _
  $region17: #{tpu_custom_call.1} parent=0 // pred_fallthru
    _
  // Predicated region
  $region18: #{tpu_custom_call.1} parent=0 // pred_check
    _
  $region19: #{tpu_custom_call.1} parent=0 // pred_check_branch
    %21 = sbr.rel (0) target = $region21
  $region20: #{tpu_custom_call.1} parent=0 // pred_region
    _
  $region21: #{tpu_custom_call.1} parent=0 // pred_fallthru
    _
  // Predicated region
  $region22: #{tpu_custom_call.1} parent=0 // pred_check
    _
  $region23: #{tpu_custom_call.1} parent=0 // pred_check_branch
    %23 = sbr.rel (0) target = $region25
  $region24: #{tpu_custom_call.1} parent=0 // pred_region
    _
  $region25: #{tpu_custom_call.1} parent=0 // pred_fallthru
    _
  // Predicated region
  $region26: #{tpu_custom_call.1} parent=0 // pred_check
    _
  $region27: #{tpu_custom_call.1} parent=0 // pred_check_branch
    %25 = sbr.rel (0) target = $region29
  $region28: #{tpu_custom_call.1} parent=0 // pred_region
    _
  $region29: #{tpu_custom_call.1} parent=0 // pred_fallthru
    _
  %v27 = vld [vmem:[%s0] sm:$0xff]
  %v28 = vld [vmem:[%s0 + $0x8] sm:$0xff]
  %v29 = vpack.c.bf16 %v28, %v27
  %v30 = vld [vmem:[%s1] sm:$0xff]
  %v31 = vld [vmem:[%s1 + $0x8] sm:$0xff]
  %v32 = vld [vmem:[%s1 + $0x10] sm:$0xff]
  %v33 = vld [vmem:[%s1 + $0x18] sm:$0xff]
  %v34 = vld [vmem:[%s2] sm:$0x3]
  %v36 = vlaneseq
  %v37 = vshrl.u32 %v36, 7
  %v38 = vsub.s32 0, %v37
  %v39 = vrot.slane %v34, %v38
  %v40 = vlaneseq
  %v41 = vshrl.u32 %v40, 7
  %v42 = vsub.s32 1, %v41
  %v43 = vrot.slane %v34, %v42
  %v50 = vunpack.c.l.b16 %v30
  %v51 = vunpack.c.h.b16 %v30
  %v52 = vunpack.c.l.b16 %v31
  %v53 = vunpack.c.h.b16 %v31
  %v54 = vunpack.c.l.b16 %v32
  %v55 = vunpack.c.h.b16 %v32
  %v56 = vunpack.c.l.b16 %v33
  %v57 = vunpack.c.h.b16 %v33
  %v58 = vpack.c.b16 %v52, %v50
  %v59 = vpack.c.b16 %v53, %v51
  %v60 = vpack.c.b16 %v56, %v54
  %v61 = vpack.c.b16 %v57, %v55
  %vm66 = vcmask 261120
  %v68 = vsel %vm66, %v29, 0
  %70 = vmatprep.subr.bf16.mxu0 0
  %71 = vmatpush1.bf16.msra.mxu0 0
  %72 = vmatprep.subr.bf16.mxu0 0
  %73 = vmatpush1.bf16.msra.mxu0 0
  %74 = vmatprep.subr.bf16.mxu0 0
  %75 = vmatpush1.bf16.msra.mxu0 0
  %76 = vmatprep.subr.bf16.mxu0 0
  %77 = vmatpush1.bf16.msra.mxu0 0
  %78 = vmatprep.subr.bf16.mxu0 0
  %79 = vmatpush1.bf16.msra.mxu0 0
  %80 = vmatprep.subr.bf16.mxu0 0
  %81 = vmatpush1.bf16.msra.mxu0 0
  %82 = vmatprep.subr.bf16.mxu0 %v61
  %83 = vmatpush1.bf16.msra.mxu0 %v60
  %84 = vmatprep.subr.bf16.mxu0 %v59
  %85 = vmatpush1.bf16.msra.mxu0 %v58
  %86 = vmatprep.subr.bf16.mxu0 0
  %87 = vmatpush2.bf16.msra.mxu0 0
  %88 = vmatprep.subr.bf16.mxu0 0
  %89 = vmatpush2.bf16.msra.mxu0 0
  %90 = vmatprep.subr.bf16.mxu0 0
  %91 = vmatpush2.bf16.msra.mxu0 0
  %92 = vmatprep.subr.bf16.mxu0 0
  %93 = vmatpush2.bf16.msra.mxu0 0
  %94 = vmatprep.subr.bf16.mxu0 0
  %95 = vmatpush2.bf16.msra.mxu0 0
  %96 = vmatprep.subr.bf16.mxu0 0
  %97 = vmatpush2.bf16.msra.mxu0 0
  %98 = vmatprep.subr.bf16.mxu0 0
  %99 = vmatpush2.bf16.msra.mxu0 0
  %100 = vmatprep.subr.bf16.mxu0 0
  %101 = vmatpush2.bf16.msra.mxu0 0
  %102 = vmatprep.mubr.bf16.mxu0 0
  %103 = vmatmul.mubr.bf16.gmra.mxu0 %v68
  %v104 = vpop.f32.mrf.mxu0
  %v105 = vadd.f32 %v39, %v104
  %v106 = vpop.f32.mrf.mxu0
  %v107 = vadd.f32 %v43, %v106
  %v108 = vpop.f32.mrf.mxu0
  %v109 = vadd.f32 %v39, %v108
  %v110 = vpop.f32.mrf.mxu0
  %v111 = vadd.f32 %v43, %v110
  %112 = vdwg.mxu0
  %v113 = vtanh.pop %v105
  %v114 = vtanh.pop %v107
  %v115 = vtanh.pop %v109
  %v116 = vtanh.pop %v111
  %v117 = vpack.c.bf16 %v115, %v113
  %v118 = vld [vmem:[%s3] sm:$0xf]
  %v119 = vld [vmem:[%s3 + $0x4] sm:$0xf]
  %v120 = vld [vmem:[%s3 + $0x8] sm:$0xf]
  %v121 = vld [vmem:[%s3 + $0xc] sm:$0xf]
  %v122 = vld [vmem:[%s3 + $0x10] sm:$0xf]
  %v123 = vld [vmem:[%s3 + $0x14] sm:$0xf]
  %v124 = vld [vmem:[%s3 + $0x18] sm:$0xf]
  %v125 = vld [vmem:[%s3 + $0x1c] sm:$0xf]
  %v126 = vld [vmem:[%s3 + $0x20] sm:$0xf]
  %v127 = vld [vmem:[%s3 + $0x24] sm:$0xf]
  %v128 = vld [vmem:[%s3 + $0x28] sm:$0xf]
  %v129 = vld [vmem:[%s3 + $0x2c] sm:$0xf]
  %v130 = vld [vmem:[%s3 + $0x30] sm:$0xf]
  %v131 = vld [vmem:[%s3 + $0x34] sm:$0xf]
  %v132 = vld [vmem:[%s3 + $0x38] sm:$0xf]
  %v133 = vld [vmem:[%s3 + $0x3c] sm:$0xf]
  %v134 = vld [vmem:[%s4] sm:$0x1]
  %v136 = vlaneseq
  %v137 = vshrl.u32 %v136, 7
  %v138 = vsub.s32 0, %v137
  %v139 = vrot.slane %v134, %v138
  %v157 = vunpack.c.l.b16 %v118
  %v158 = vunpack.c.l.b16 %v119
  %v159 = vunpack.c.l.b16 %v120
  %v160 = vunpack.c.l.b16 %v121
  %v161 = vunpack.c.l.b16 %v122
  %v162 = vunpack.c.l.b16 %v123
  %v163 = vunpack.c.l.b16 %v124
  %v164 = vunpack.c.l.b16 %v125
  %v165 = vunpack.c.l.b16 %v126
  %v166 = vunpack.c.l.b16 %v127
  %v167 = vunpack.c.l.b16 %v128
  %v168 = vunpack.c.l.b16 %v129
  %v169 = vunpack.c.l.b16 %v130
  %v170 = vunpack.c.l.b16 %v131
  %v171 = vunpack.c.l.b16 %v132
  %v172 = vunpack.c.l.b16 %v133
  %v173 = vpack.c.b16 %v158, %v157
  %v174 = vpack.c.b16 %v160, %v159
  %v175 = vpack.c.b16 %v162, %v161
  %v176 = vpack.c.b16 %v164, %v163
  %v177 = vpack.c.b16 %v166, %v165
  %v178 = vpack.c.b16 %v168, %v167
  %v179 = vpack.c.b16 %v170, %v169
  %v180 = vpack.c.b16 %v172, %v171
  %189 = vmatprep.subr.bf16.mxu0 0
  %190 = vmatpush1.bf16.msra.mxu0 %v180
  %191 = vmatprep.subr.bf16.mxu0 0
  %192 = vmatpush1.bf16.msra.mxu0 %v179
  %193 = vmatprep.subr.bf16.mxu0 0
  %194 = vmatpush1.bf16.msra.mxu0 %v178
  %195 = vmatprep.subr.bf16.mxu0 0
  %196 = vmatpush1.bf16.msra.mxu0 %v177
  %197 = vmatprep.subr.bf16.mxu0 0
  %198 = vmatpush1.bf16.msra.mxu0 %v176
  %199 = vmatprep.subr.bf16.mxu0 0
  %200 = vmatpush1.bf16.msra.mxu0 %v175
  %201 = vmatprep.subr.bf16.mxu0 0
  %202 = vmatpush1.bf16.msra.mxu0 %v174
  %203 = vmatprep.subr.bf16.mxu0 0
  %204 = vmatpush1.bf16.msra.mxu0 %v173
  %205 = vmatprep.subr.bf16.mxu0 0
  %206 = vmatpush2.bf16.msra.mxu0 0
  %207 = vmatprep.subr.bf16.mxu0 0
  %208 = vmatpush2.bf16.msra.mxu0 0
  %209 = vmatprep.subr.bf16.mxu0 0
  %210 = vmatpush2.bf16.msra.mxu0 0
  %211 = vmatprep.subr.bf16.mxu0 0
  %212 = vmatpush2.bf16.msra.mxu0 0
  %213 = vmatprep.subr.bf16.mxu0 0
  %214 = vmatpush2.bf16.msra.mxu0 0
  %215 = vmatprep.subr.bf16.mxu0 0
  %216 = vmatpush2.bf16.msra.mxu0 0
  %217 = vmatprep.subr.bf16.mxu0 0
  %218 = vmatpush2.bf16.msra.mxu0 0
  %219 = vmatprep.subr.bf16.mxu0 0
  %220 = vmatpush2.bf16.msra.mxu0 0
  %221 = vmatprep.mubr.bf16.mxu0 0
  %222 = vmatmul.mubr.bf16.gmra.mxu0 %v117
  %v223 = vpop.f32.mrf.mxu0
  %v224 = vadd.f32 %v139, %v223
  %v225 = vpop.f32.mrf.mxu0
  %v226 = vpop.f32.mrf.mxu0
  %v227 = vadd.f32 %v139, %v226
  %v228 = vpop.f32.mrf.mxu0
  %229 = vdwg.mxu0
  %v230 = vtanh.pop %v224
  %v231 = vtanh.pop %v227
  %v232 = vpack.c.bf16 %v231, %v230
  %v233 = vpack.c.bf16 %v116, %v114
  %v234 = vld [vmem:[%s5] sm:$0xf]
  %v235 = vld [vmem:[%s5 + $0x4] sm:$0xf]
  %v236 = vld [vmem:[%s5 + $0x8] sm:$0xf]
  %v237 = vld [vmem:[%s5 + $0xc] sm:$0xf]
  %v238 = vld [vmem:[%s5 + $0x10] sm:$0xf]
  %v239 = vld [vmem:[%s5 + $0x14] sm:$0xf]
  %v240 = vld [vmem:[%s5 + $0x18] sm:$0xf]
  %v241 = vld [vmem:[%s5 + $0x1c] sm:$0xf]
  %v242 = vld [vmem:[%s5 + $0x20] sm:$0xf]
  %v243 = vld [vmem:[%s5 + $0x24] sm:$0xf]
  %v244 = vld [vmem:[%s5 + $0x28] sm:$0xf]
  %v245 = vld [vmem:[%s5 + $0x2c] sm:$0xf]
  %v246 = vld [vmem:[%s5 + $0x30] sm:$0xf]
  %v247 = vld [vmem:[%s5 + $0x34] sm:$0xf]
  %v248 = vld [vmem:[%s5 + $0x38] sm:$0xf]
  %v249 = vld [vmem:[%s5 + $0x3c] sm:$0xf]
  %v250 = vld [vmem:[%s5 + $0x40] sm:$0xf]
  %v251 = vld [vmem:[%s5 + $0x44] sm:$0xf]
  %v252 = vld [vmem:[%s5 + $0x48] sm:$0xf]
  %v253 = vld [vmem:[%s5 + $0x4c] sm:$0xf]
  %v254 = vld [vmem:[%s5 + $0x50] sm:$0xf]
  %v255 = vld [vmem:[%s5 + $0x54] sm:$0xf]
  %v256 = vld [vmem:[%s5 + $0x58] sm:$0xf]
  %v257 = vld [vmem:[%s5 + $0x5c] sm:$0xf]
  %v258 = vld [vmem:[%s5 + $0x60] sm:$0xf]
  %v259 = vld [vmem:[%s5 + $0x64] sm:$0xf]
  %v260 = vld [vmem:[%s5 + $0x68] sm:$0xf]
  %v261 = vld [vmem:[%s5 + $0x6c] sm:$0xf]
  %v262 = vld [vmem:[%s5 + $0x70] sm:$0xf]
  %v263 = vld [vmem:[%s5 + $0x74] sm:$0xf]
  %v264 = vld [vmem:[%s5 + $0x78] sm:$0xf]
  %v265 = vld [vmem:[%s5 + $0x7c] sm:$0xf]
  %v266 = vld [vmem:[%s6] sm:$0x1]
  %v268 = vlaneseq
  %v269 = vshrl.u32 %v268, 7
  %v270 = vsub.s32 0, %v269
  %v271 = vrot.slane %v266, %v270
  %v305 = vunpack.c.l.b16 %v234
  %v306 = vunpack.c.l.b16 %v235
  %v307 = vunpack.c.l.b16 %v236
  %v308 = vunpack.c.l.b16 %v237
  %v309 = vunpack.c.l.b16 %v238
  %v310 = vunpack.c.l.b16 %v239
  %v311 = vunpack.c.l.b16 %v240
  %v312 = vunpack.c.l.b16 %v241
  %v313 = vunpack.c.l.b16 %v242
  %v314 = vunpack.c.l.b16 %v243
  %v315 = vunpack.c.l.b16 %v244
  %v316 = vunpack.c.l.b16 %v245
  %v317 = vunpack.c.l.b16 %v246
  %v318 = vunpack.c.l.b16 %v247
  %v319 = vunpack.c.l.b16 %v248
  %v320 = vunpack.c.l.b16 %v249
  %v321 = vunpack.c.l.b16 %v250
  %v322 = vunpack.c.l.b16 %v251
  %v323 = vunpack.c.l.b16 %v252
  %v324 = vunpack.c.l.b16 %v253
  %v325 = vunpack.c.l.b16 %v254
  %v326 = vunpack.c.l.b16 %v255
  %v327 = vunpack.c.l.b16 %v256
  %v328 = vunpack.c.l.b16 %v257
  %v329 = vunpack.c.l.b16 %v258
  %v330 = vunpack.c.l.b16 %v259
  %v331 = vunpack.c.l.b16 %v260
  %v332 = vunpack.c.l.b16 %v261
  %v333 = vunpack.c.l.b16 %v262
  %v334 = vunpack.c.l.b16 %v263
  %v335 = vunpack.c.l.b16 %v264
  %v336 = vunpack.c.l.b16 %v265
  %v337 = vpack.c.b16 %v306, %v305
  %v338 = vpack.c.b16 %v308, %v307
  %v339 = vpack.c.b16 %v310, %v309
  %v340 = vpack.c.b16 %v312, %v311
  %v341 = vpack.c.b16 %v314, %v313
  %v342 = vpack.c.b16 %v316, %v315
  %v343 = vpack.c.b16 %v318, %v317
  %v344 = vpack.c.b16 %v320, %v319
  %v345 = vpack.c.b16 %v322, %v321
  %v346 = vpack.c.b16 %v324, %v323
  %v347 = vpack.c.b16 %v326, %v325
  %v348 = vpack.c.b16 %v328, %v327
  %v349 = vpack.c.b16 %v330, %v329
  %v350 = vpack.c.b16 %v332, %v331
  %v351 = vpack.c.b16 %v334, %v333
  %v352 = vpack.c.b16 %v336, %v335
  %369 = vmatprep.subr.bf16.mxu0 0
  %370 = vmatpush1.bf16.msra.mxu0 %v344
  %371 = vmatprep.subr.bf16.mxu0 0
  %372 = vmatpush1.bf16.msra.mxu0 %v343
  %373 = vmatprep.subr.bf16.mxu0 0
  %374 = vmatpush1.bf16.msra.mxu0 %v342
  %375 = vmatprep.subr.bf16.mxu0 0
  %376 = vmatpush1.bf16.msra.mxu0 %v341
  %377 = vmatprep.subr.bf16.mxu0 0
  %378 = vmatpush1.bf16.msra.mxu0 %v340
  %379 = vmatprep.subr.bf16.mxu0 0
  %380 = vmatpush1.bf16.msra.mxu0 %v339
  %381 = vmatprep.subr.bf16.mxu0 0
  %382 = vmatpush1.bf16.msra.mxu0 %v338
  %383 = vmatprep.subr.bf16.mxu0 0
  %384 = vmatpush1.bf16.msra.mxu0 %v337
  %385 = vmatprep.subr.bf16.mxu0 0
  %386 = vmatpush2.bf16.msra.mxu0 %v352
  %387 = vmatprep.subr.bf16.mxu0 0
  %388 = vmatpush2.bf16.msra.mxu0 %v351
  %389 = vmatprep.subr.bf16.mxu0 0
  %390 = vmatpush2.bf16.msra.mxu0 %v350
  %391 = vmatprep.subr.bf16.mxu0 0
  %392 = vmatpush2.bf16.msra.mxu0 %v349
  %393 = vmatprep.subr.bf16.mxu0 0
  %394 = vmatpush2.bf16.msra.mxu0 %v348
  %395 = vmatprep.subr.bf16.mxu0 0
  %396 = vmatpush2.bf16.msra.mxu0 %v347
  %397 = vmatprep.subr.bf16.mxu0 0
  %398 = vmatpush2.bf16.msra.mxu0 %v346
  %399 = vmatprep.subr.bf16.mxu0 0
  %400 = vmatpush2.bf16.msra.mxu0 %v345
  %401 = vmatprep.mubr.bf16.mxu0 %v233
  %402 = vmatmul.mubr.bf16.gmra.mxu0 %v232
  %v403 = vpop.f32.mrf.mxu0
  %v404 = vadd.f32 %v271, %v403
  %v405 = vpop.f32.mrf.mxu0
  %v406 = vpop.f32.mrf.mxu0
  %v407 = vadd.f32 %v271, %v406
  %v408 = vpop.f32.mrf.mxu0
  %409 = vdwg.mxu0
  %v410 = vlaneseq
  %v411 = vand.u32 %v410, 127
  %vm412 = vcmp.eq.s32.totalorder %v411, 0
  %vm413 = vcmp.lt.f32.partialorder %v404, 0.0
  %vm414 = vcmp.lt.f32.partialorder %v407, 0.0
  %v415 = vsel %vm413, -1.0, 1.0
  %v416 = vsel %vm414, -1.0, 1.0
  %v417 = vand.u32 2147483647, %v404
  %v418 = vand.u32 2147483647, %v407
  %vm419 = vcmp.gt.f32.partialorder %v417, 2.4142137
  %vm420 = vcmp.gt.f32.partialorder %v418, 2.4142137
  %vm421 = vcmp.gt.f32.partialorder %v417, 0.41421357
  %vm422 = vcmp.gt.f32.partialorder %v418, 0.41421357
  %vm423 = vmxor %vm419, 1
  %vm424 = vmxor %vm420, 1
  %vm425 = vmand %vm421, %vm423
  %vm426 = vmand %vm422, %vm424
  %v427 = vsel %vm419, %v417, 1.0
  %v428 = vsel %vm420, %v418, 1.0
  %v429 = vrcp.pop %v427
  %v430 = vmul.f32 -1.0, %v429
  %v431 = vrcp.pop %v428
  %v432 = vmul.f32 -1.0, %v431
  %v433 = vsub.f32 %v417, 1.0
  %v434 = vsub.f32 %v418, 1.0
  %v435 = vadd.f32 %v417, 1.0
  %v436 = vadd.f32 %v418, 1.0
  %v437 = vrcp.pop %v435
  %v438 = vmul.f32 %v433, %v437
  %v439 = vrcp.pop %v436
  %v440 = vmul.f32 %v434, %v439
  %v441 = vsel %vm425, %v438, %v417
  %v442 = vsel %vm426, %v440, %v418
  %v443 = vsel %vm419, %v430, %v441
  %v444 = vsel %vm420, %v432, %v442
  %v445 = vsel %vm425, 0.7853982, 0.0
  %v446 = vsel %vm426, 0.7853982, 0.0
  %v447 = vsel %vm419, 1.5707964, %v445
  %v448 = vsel %vm420, 1.5707964, %v446
  %v449 = vmul.f32 %v443, %v443
  %v450 = vmul.f32 %v444, %v444
  %v451 = vmul.f32 %v449, 0.080537446
  %v452 = vmul.f32 %v450, 0.080537446
  %v453 = vsub.f32 %v451, 0.13877685
  %v454 = vsub.f32 %v452, 0.13877685
  %v455 = vmul.f32 %v453, %v449
  %v456 = vmul.f32 %v454, %v450
  %v457 = vadd.f32 %v455, 0.19977711
  %v458 = vadd.f32 %v456, 0.19977711
  %v459 = vmul.f32 %v457, %v449
  %v460 = vmul.f32 %v458, %v450
  %v461 = vsub.f32 %v459, 0.3333295
  %v462 = vsub.f32 %v460, 0.3333295
  %v463 = vmul.f32 %v461, %v449
  %v464 = vmul.f32 %v462, %v450
  %v465 = vmul.f32 %v463, %v443
  %v466 = vmul.f32 %v464, %v444
  %v467 = vadd.f32 %v465, %v443
  %v468 = vadd.f32 %v466, %v444
  %v469 = vadd.f32 %v447, %v467
  %v470 = vadd.f32 %v448, %v468
  %v471 = vmul.f32 %v415, %v469
  %v472 = vmul.f32 %v416, %v470
  %v473 = vmul.f32 %v404, 1.442695
  %v474 = vpow.pop %v473
  %v475 = vmul.f32 %v407, 1.442695
  %v476 = vpow.pop %v475
  %v477 = vsel %vm412, %v471, %v474
  %v478 = vsel %vm412, %v472, %v476
  %vm479 = vcmask 15360
  %480 = vst.msk [vmem:[%s7] sm:$0xff] %vm479, %v477
  %481 = vst.msk [vmem:[%s7 + $0x8] sm:$0xff] %vm479, %v478
  // Predicated region
  $region30: #{tpu_custom_call.1} parent=0 // pred_check
    _
  $region31: #{tpu_custom_call.1} parent=0 // pred_check_branch
    %483 = sbr.rel (0) target = $region33
  $region32: #{tpu_custom_call.1} parent=0 // pred_region
    _
  $region33: #{tpu_custom_call.1} parent=0 // pred_fallthru
    _
  // Predicated region
  $region34: #{tpu_custom_call.1} parent=0 // pred_check
    _
  $region35: #{tpu_custom_call.1} parent=0 // pred_check_branch
    %485 = sbr.rel (0) target = $region37
  $region36: #{tpu_custom_call.1} parent=0 // pred_region
    _
  $region37: #{tpu_custom_call.1} parent=0 // pred_fallthru
    _

</llo_original>
